<compile_context>
chip_gen: v5e
topology: v5e:2x2
jax: 0.10.0
libtpu: 0.0.40
codegen_flags: <defaults>
</compile_context>

<pallas_src>
import functools
import math

import jax
import jax.numpy as jnp
from jax.experimental import pallas as pl
from jax.experimental.pallas import tpu as pltpu


_LANE = 128
_MAX_TM = 1024              # hard cap on the row tile (128 MiB chips can afford it)
_MIN_TM_TARGET = 256        # don't shrink tiles below this just to add grid steps
_MIN_GRID_STEPS = 8         # >= 4 pipeline steps per TensorCore (2 TCs on v7x)
_N_SPLIT_THRESHOLD = 8192   # tile the output dim only for very wide layers
_N_TILE = 4096
_SMALL_OUT_PAD_LIMIT = 512  # pad+slice only for narrow ragged outputs


def _round_up(n, m):
    return ((n + m - 1) // m) * m


def _vmem_budgets():
    """(tile_budget, scoped_limit) derived from the chip's actual VMEM capacity."""
    try:
        cap = int(pltpu.get_tpu_info().vmem_capacity_bytes)
        if cap <= 0:
            raise ValueError
    except Exception:
        cap = 64 * 1024 * 1024  # conservative (v7x-sized) fallback
    return cap // 2, (3 * cap) // 4


def _sublane_pack(dtype):
    # Rows per packed sublane tile: 8 for f32, 16 for bf16/f16, 32 for int8/fp8.
    return max(8, 32 // jnp.dtype(dtype).itemsize)


def _lora_kernel(x_ref, a_ref, b_ref, o_ref, *, scaling):
    # (tm, in) @ (in, r) -> (tm, r), f32 accumulation on the MXU.
    xa = jnp.dot(x_ref[...], a_ref[...], preferred_element_type=jnp.float32)
    # Scale the small (tm, r) intermediate (far fewer VPU ops than scaling the
    # (tm, out) tile); mathematically identical since scaling is a scalar.
    xa = xa * scaling
    # Keep the second matmul on the fast MXU path for bf16 params (no-op for
    # f32); accumulation stays f32.
    xa = xa.astype(b_ref.dtype)
    out = jnp.dot(xa, b_ref[...], preferred_element_type=jnp.float32)
    o_ref[...] = out.astype(o_ref.dtype)


def _choose_tm(m_rows, in_features, rank, out_block_cols, dtype, tile_budget):
    """Largest row tile whose VMEM-resident working set fits the tile budget."""
    pack = _sublane_pack(dtype)
    itemsize = jnp.dtype(dtype).itemsize
    # Grid-invariant residents: single-buffered A block + one B block.
    fixed = itemsize * (in_features * rank + rank * out_block_cols)
    budget = max(tile_budget - fixed, 0)
    # Per-row: double-buffered x / out pipeline tiles, plus the f32 matmul
    # results (xa and the pre-cast (tm, out_block) accumulator).
    per_row = (itemsize * 2 * (in_features + out_block_cols)
               + 4 * (rank + out_block_cols))
    tm = budget // max(per_row, 1)
    tm = max(pack, min(_MAX_TM, (tm // pack) * pack))
    # Keep >= ~_MIN_GRID_STEPS grid steps (so both v7x TCs get a real pipeline)
    # as long as tiles stay >= _MIN_TM_TARGET rows; else favour the bigger tile.
    steps_cap = max(pack, (pl.cdiv(m_rows, _MIN_GRID_STEPS) // pack) * pack)
    tm = min(tm, max(_round_up(_MIN_TM_TARGET, pack), steps_cap))
    # No point tiling past the (pack-rounded) total row count.
    tm = min(tm, _round_up(m_rows, pack))
    return int(tm)


def lora_forward(x, lora_A, lora_B, *, alpha=1.0, tm=None):
    """Computes x @ lora_A @ lora_B * (alpha / rank) with a fused Pallas kernel."""
    in_features, rank = lora_A.shape
    rank_b, out_features = lora_B.shape
    assert rank == rank_b
    assert x.shape[-1] == in_features
    scaling = alpha / rank

    orig_shape = x.shape
    x2d = x.reshape(-1, in_features)
    M = x2d.shape[0]

    # Output-lane policy (see header): pad+slice only for narrow ragged outputs.
    pad_out = (out_features % _LANE != 0) and (out_features <= _SMALL_OUT_PAD_LIMIT)
    if pad_out:
        out_cols = _round_up(out_features, _LANE)
        lora_B = jnp.pad(lora_B, ((0, 0), (0, out_cols - out_features)))
    else:
        out_cols = out_features

    # Tile the output dim only for very wide layers so tm does not shrink with
    # out_features; x's block is constant along N, so it is not re-DMA'd.
    tn = _N_TILE if out_cols > _N_SPLIT_THRESHOLD else out_cols
    grid_n = pl.cdiv(out_cols, tn)

    tile_budget, vmem_limit = _vmem_budgets()
    if tm is None:
        tm = _choose_tm(M, in_features, rank, min(tn, out_cols), x.dtype, tile_budget)
    grid_m = pl.cdiv(M, tm)  # no host-side padding of x; ragged last block OK

    kernel = functools.partial(_lora_kernel, scaling=scaling)

    itemsize = jnp.dtype(x.dtype).itemsize
    cost = pl.CostEstimate(
        flops=2 * M * rank * (in_features + out_cols),
        transcendentals=0,
        bytes_accessed=(
            M * in_features * itemsize
            + lora_A.size * jnp.dtype(lora_A.dtype).itemsize
            + lora_B.size * jnp.dtype(lora_B.dtype).itemsize
            + M * out_cols * itemsize
        ),
    )

    # B: single-buffer when its block never changes (grid_n == 1) to free VMEM
    # for a larger row tile; double-buffer it when it actually varies along N.
    b_pipeline = pl.Buffered(1) if grid_n == 1 else pl.Buffered(2)

    out = pl.pallas_call(
        kernel,
        out_shape=jax.ShapeDtypeStruct((M, out_cols), x.dtype),
        grid_spec=pltpu.PrefetchScalarGridSpec(
            num_scalar_prefetch=0,
            grid=(grid_m, grid_n),
            in_specs=[
                # Rows of x tiled and double-buffered by the auto-pipeline;
                # constant along N so the block stays resident across N steps.
                pl.BlockSpec((tm, in_features), lambda i, j: (i, 0)),
                # A never changes across the grid: single-buffer it.
                pl.BlockSpec((in_features, rank), lambda i, j: (0, 0),
                             pipeline_mode=pl.Buffered(1)),
                pl.BlockSpec((rank, tn), lambda i, j: (0, j),
                             pipeline_mode=b_pipeline),
            ],
            out_specs=pl.BlockSpec((tm, tn), lambda i, j: (i, j)),
        ),
        compiler_params=pltpu.CompilerParams(
            # M axis shards across TensorCores (v7x); N has no reduction but is
            # kept 'arbitrary' so x's resident block is reused sequentially.
            dimension_semantics=("parallel", "arbitrary"),
            vmem_limit_bytes=vmem_limit,
        ),
        cost_estimate=cost,
    )(x2d, lora_A, lora_B)

    if pad_out:
        out = out[:, :out_features]
    return out.reshape(*orig_shape[:-1], out_features)


if __name__ == "__main__":
    # Module-implied shapes (kept small): in_features=32, out_features=32, rank=4.
    in_features, out_features, rank, alpha = 32, 32, 4, 1.0
    batch, seq = 2, 8  # x: [batch, seq, in_features] -> M = 16 rows

    key = jax.random.PRNGKey(0)
    kx, ka, kb = jax.random.split(key, 3)

    x = jax.random.normal(kx, (batch, seq, in_features), dtype=jnp.float32)

    # lora_A follows kaiming_uniform_(a=sqrt(5)) bounds for an [in, rank]
    # tensor: U(-1/sqrt(rank), 1/sqrt(rank)).  The module zero-inits lora_B
    # (output would be identically zero), so use a small random lora_B instead
    # to actually exercise the kernel.
    bound = 1.0 / math.sqrt(rank)
    lora_A = jax.random.uniform(
        ka, (in_features, rank), minval=-bound, maxval=bound, dtype=jnp.float32
    )
    lora_B = 0.01 * jax.random.normal(kb, (rank, out_features), dtype=jnp.float32)

    out = lora_forward(x, lora_A, lora_B, alpha=alpha)
    out = jax.block_until_ready(out)

    # Reference check in plain JAX.
    ref = (x @ lora_A @ lora_B) * (alpha / rank)
    assert out.shape == (batch, seq, out_features)
    assert jnp.allclose(out, ref, atol=1e-5, rtol=1e-5)

    print("KERNEL_OK")
</pallas_src>

<mosaic_0001>
module attributes {stable_mosaic.version = 11 : i64} {
  func.func @_lora_kernel(%arg0: i32, %arg1: i32, %arg2: memref<16x32xf32, #tpu.memory_space<vmem>>, %arg3: memref<32x4xf32, #tpu.memory_space<vmem>>, %arg4: memref<4x128xf32, #tpu.memory_space<vmem>>, %arg5: memref<16x128xf32, #tpu.memory_space<vmem>>) attributes {dimension_semantics = [#tpu.dimension_semantics<parallel>, #tpu.dimension_semantics<arbitrary>], iteration_bounds = array<i64: 1, 1>, scalar_prefetch = 0 : i64, scratch_operands = 0 : i64, tpu.core_type = #tpu.core_type<tc>, window_params = [{transform_indices = @transform_0, window_bounds = array<i64: 16, 32>}, {pipeline_mode = #tpu.pipeline_mode<synchronous>, transform_indices = @transform_1, window_bounds = array<i64: 32, 4>}, {pipeline_mode = #tpu.pipeline_mode<synchronous>, transform_indices = @transform_2, window_bounds = array<i64: 4, 128>}, {transform_indices = @transform_3, window_bounds = array<i64: 16, 128>}]} {
    %c0 = arith.constant 0 : index
    %c0_0 = arith.constant 0 : index
    %0 = vector.load %arg2[%c0, %c0_0] : memref<16x32xf32, #tpu.memory_space<vmem>>, vector<16x32xf32>
    %c0_1 = arith.constant 0 : index
    %c0_2 = arith.constant 0 : index
    %1 = vector.load %arg3[%c0_1, %c0_2] : memref<32x4xf32, #tpu.memory_space<vmem>>, vector<32x4xf32>
    %cst = arith.constant dense<0.000000e+00> : vector<16x4xf32>
    %2 = tpu.matmul %0, %1, %cst {dimension_numbers = #tpu.dot_dimension_numbers<[1], [0], [0], [1], [0, 0, 1, 1], [], []>} : vector<16x32xf32>, vector<32x4xf32>, vector<16x4xf32> -> vector<16x4xf32>
    %cst_3 = arith.constant 2.500000e-01 : f32
    %3 = vector.broadcast %cst_3 : f32 to vector<16x4xf32>
    %4 = arith.mulf %2, %3 : vector<16x4xf32>
    %c0_4 = arith.constant 0 : index
    %c0_5 = arith.constant 0 : index
    %5 = vector.load %arg4[%c0_4, %c0_5] : memref<4x128xf32, #tpu.memory_space<vmem>>, vector<4x128xf32>
    %cst_6 = arith.constant dense<0.000000e+00> : vector<16x128xf32>
    %6 = tpu.matmul %4, %5, %cst_6 {dimension_numbers = #tpu.dot_dimension_numbers<[1], [0], [0], [1], [0, 0, 1, 1], [], []>} : vector<16x4xf32>, vector<4x128xf32>, vector<16x128xf32> -> vector<16x128xf32>
    %c0_7 = arith.constant 0 : index
    %c0_8 = arith.constant 0 : index
    %7 = vector.load %arg5[%c0_7, %c0_8] : memref<16x128xf32, #tpu.memory_space<vmem>>, vector<16x128xf32>
    tpu.vector_store %arg5[%c0_7, %c0_8], %6 {strides = array<i32>} : memref<16x128xf32, #tpu.memory_space<vmem>>, vector<16x128xf32>,
    return
  }
  func.func @transform_0(%arg0: i32, %arg1: i32) -> (i32, i32) {
    %c0_i32 = arith.constant 0 : i32
    %c0_i32_0 = arith.constant 0 : i32
    return %arg0, %c0_i32 : i32, i32
  }
  func.func @transform_1(%arg0: i32, %arg1: i32) -> (i32, i32) {
    %c0_i32 = arith.constant 0 : i32
    %c0_i32_0 = arith.constant 0 : i32
    %c0_i32_1 = arith.constant 0 : i32
    return %c0_i32, %c0_i32_0 : i32, i32
  }
  func.func @transform_2(%arg0: i32, %arg1: i32) -> (i32, i32) {
    %c0_i32 = arith.constant 0 : i32
    %c0_i32_0 = arith.constant 0 : i32
    return %c0_i32, %arg1 : i32, i32
  }
  func.func @transform_3(%arg0: i32, %arg1: i32) -> (i32, i32) {
    %c0_i32 = arith.constant 0 : i32
    return %arg0, %arg1 : i32, i32
  }
}

</mosaic_0001>

<llo_original>
// kernel: tpu_custom_call.1
$region0: #{tpu_custom_call.1}
  #allocation0 [shape = 'u32[]', space=smem, size = 0x4, offset = 0x4, fixed_abs, tag = 'smem constant byte address 0x4 - core index']
  #allocation1 [shape = 'u32[72,128]{1,0:T(1,128)}', space=vmem, size = 0x9000, scoped, tag = 'internal scratch']
  %s0 = inlined_call_operand.vmem [shape: f32[16,32], index: 0, kind: input, shape index: {}]
  %s1 = inlined_call_operand.vmem [shape: f32[32,4], index: 1, kind: input, shape index: {}]
  %s2 = inlined_call_operand.vmem [shape: f32[4,128], index: 2, kind: input, shape index: {}]
  %s3 = inlined_call_operand.hbm [shape: f32[16,128], index: 3, kind: output, shape index: {}]
  %s4 = sld [smem:[#allocation0]]
  $region22: #{tpu_custom_call.1} parent=0
    _
  %s6 = ssub.s32 1, %s4
  %s7 = scalar_select 0, %s6, %s4
  $region1: #{tpu_custom_call.1} parent=0
    #allocation2 [shape = 'u8[8192]{0}', space=vmem, size = 0x2000, scoped, tag = 'output window, operand 0, single buffered']
    #allocation3 [shape = 's32[1]{0}', space=sflag, size = 0x4, scoped, tag = 'scoped memory for tpu_custom_call.1']
    %8 = vsyncpa [#allocation3], 0
    // Predicated region
    $region2: #{tpu_custom_call.1} parent=1 // pred_check
      _
    $region3: #{tpu_custom_call.1} parent=1 // pred_check_branch
      %10 = sbr.rel (0) target = $region5
    $region4: #{tpu_custom_call.1} parent=1 // pred_region
      _
    $region5: #{tpu_custom_call.1} parent=1 // pred_fallthru
      _
    // Predicated region
    $region6: #{tpu_custom_call.1} parent=1 // pred_check
      _
    $region7: #{tpu_custom_call.1} parent=1 // pred_check_branch
      %12 = sbr.rel (0) target = $region9
    $region8: #{tpu_custom_call.1} parent=1 // pred_region
      _
    $region9: #{tpu_custom_call.1} parent=1 // pred_fallthru
      _
    // Predicated region
    $region10: #{tpu_custom_call.1} parent=1 // pred_check
      _
    $region11: #{tpu_custom_call.1} parent=1 // pred_check_branch
      %14 = sbr.rel (0) target = $region13
    $region12: #{tpu_custom_call.1} parent=1 // pred_region
      _
    $region13: #{tpu_custom_call.1} parent=1 // pred_fallthru
      _
    %v15 = vld [vmem:[%s0] sm:$0xff]
    %v16 = vld [vmem:[%s0 + $0x8] sm:$0xff]
    %v17 = vld [vmem:[%s1] sm:$0xff]
    %v18 = vld [vmem:[%s1 + $0x8] sm:$0xff]
    %v19 = vld [vmem:[%s1 + $0x10] sm:$0xff]
    %v20 = vld [vmem:[%s1 + $0x18] sm:$0xff]
    %vm21 = vcmask 261120
    %v23 = vsel %vm21, %v15, 0
    %v26 = vsel %vm21, %v16, 0
    %28 = vmatpush.msra.mxu0 0.0
    %29 = vmatpush.msra.mxu0 0.0
    %30 = vmatpush.msra.mxu0 0.0
    %31 = vmatpush.msra.mxu0 0.0
    %32 = vmatpush.msra.mxu0 0.0
    %33 = vmatpush.msra.mxu0 0.0
    %34 = vmatpush.msra.mxu0 0.0
    %35 = vmatpush.msra.mxu0 0.0
    %36 = vmatpush.msra.mxu0 0.0
    %37 = vmatpush.msra.mxu0 0.0
    %38 = vmatpush.msra.mxu0 0.0
    %39 = vmatpush.msra.mxu0 0.0
    %40 = vmatpush.msra.mxu0 %v20
    %41 = vmatpush.msra.mxu0 %v19
    %42 = vmatpush.msra.mxu0 %v18
    %43 = vmatpush.msra.mxu0 %v17
    %44 = vmatmul.f32.gmra.mxu0 %v23
    %v45 = vpop.f32.mrf.mxu0
    %v46 = vadd.f32 0.0, %v45
    %47 = vmatmul.f32.gmra.mxu0 %v26
    %v48 = vpop.f32.mrf.mxu0
    %v49 = vadd.f32 0.0, %v48
    %50 = vdwg.mxu0
    %v51 = vmul.f32 %v46, 0.25
    %v52 = vmul.f32 %v49, 0.25
    %v53 = vld [vmem:[%s2] sm:$0xf]
    %vm54 = vcmask 31744
    %v56 = vsel %vm54, %v51, 0
    %v59 = vsel %vm54, %v52, 0
    %vm61 = vcmask 1043456
    %v63 = vsel %vm61, %v53, 0
    %65 = vmatpush.msra.mxu0 0.0
    %66 = vmatpush.msra.mxu0 0.0
    %67 = vmatpush.msra.mxu0 0.0
    %68 = vmatpush.msra.mxu0 0.0
    %69 = vmatpush.msra.mxu0 0.0
    %70 = vmatpush.msra.mxu0 0.0
    %71 = vmatpush.msra.mxu0 0.0
    %72 = vmatpush.msra.mxu0 0.0
    %73 = vmatpush.msra.mxu0 0.0
    %74 = vmatpush.msra.mxu0 0.0
    %75 = vmatpush.msra.mxu0 0.0
    %76 = vmatpush.msra.mxu0 0.0
    %77 = vmatpush.msra.mxu0 0.0
    %78 = vmatpush.msra.mxu0 0.0
    %79 = vmatpush.msra.mxu0 0.0
    %80 = vmatpush.msra.mxu0 %v63
    %81 = vmatmul.f32.gmra.mxu0 %v56
    %v82 = vpop.f32.mrf.mxu0
    %v83 = vadd.f32 0.0, %v82
    %84 = vmatmul.f32.gmra.mxu0 %v59
    %v85 = vpop.f32.mrf.mxu0
    %v86 = vadd.f32 0.0, %v85
    %87 = vdwg.mxu0
    %88 = vst [vmem:[#allocation2] sm:$0xff] %v83
    %89 = vst [vmem:[#allocation2 + $0x8] sm:$0xff] %v86
    // Predicated region
    $region14: #{tpu_custom_call.1} parent=1 // pred_check
      _
    $region15: #{tpu_custom_call.1} parent=1 // pred_check_branch
      %91 = sbr.rel (0) target = $region17
    $region16: #{tpu_custom_call.1} parent=1 // pred_region
      %93 = vsyncadd [#allocation3], 0
      %s94 = sshll.u32 [#allocation2], 4
      %s95 = int_to_ptr.vmem [resolvable:$true] %s94
      %s96 = sshll.u32 %s3, 4
      %s97 = int_to_ptr.hbm [resolvable:$true] %s96
      %102 = dma.vmem_to_hbm [thread:$0]  %s95, 256, %s97, [#allocation3], 128, 128, 8
    $region17: #{tpu_custom_call.1} parent=1 // pred_fallthru
      _
    // Predicated region
    $region18: #{tpu_custom_call.1} parent=1 // pred_check
      _
    $region19: #{tpu_custom_call.1} parent=1 // pred_check_branch
      %104 = sbr.rel (0) target = $region21
    $region20: #{tpu_custom_call.1} parent=1 // pred_region
      %106 = dma.done [#allocation3], 256
    $region21: #{tpu_custom_call.1} parent=1 // pred_fallthru
      _
    %107 = vsyncpa [#allocation3], 1

</llo_original>
